<compile_context>
chip_gen: v5e
topology: v5e:2x2
jax: 0.10.0
libtpu: 0.0.40
codegen_flags: <defaults>
</compile_context>

<pallas_src>
import functools

import jax
import jax.numpy as jnp
import numpy as np
from jax.experimental import pallas as pl
from jax.experimental.pallas import tpu as pltpu

_DEFAULT_BLOCK_BYTES = 6 << 20      # per data stream, per pipeline buffer
_MAX_COLS = 16384                   # keep row tiles pipelineable
_COL_TARGET = 4096                  # preferred slab-row width (lanes)


def _wsum_kernel(w_ref, t_ref, p_ref, o_ref, acc_ref, *,
                 rows, tile_r, cols, tiles_per_core, mask_from, fold8, needs_mask):
    """Streaming sum over row tiles of  w_row * |t - p|  on a (rows, cols) slab.

    The per-row weight (identical for every slab row) is factored out: each
    step only folds |t - p| into the accumulator with plain vreg adds; the
    weight multiply + cross-sublane + cross-lane reductions run once, in the
    final step of each core's sub-grid.
    """
    c = pl.program_id(0)            # TensorCore split (leading "parallel" axis)
    i = pl.program_id(1)            # row-tile index within this core's share

    @pl.when(i == 0)
    def _init():
        acc_ref[...] = jnp.zeros_like(acc_ref)

    d = jnp.abs(t_ref[...].astype(jnp.float32) - p_ref[...].astype(jnp.float32))

    def _accumulate(x):
        if fold8:
            # (tile_r, cols) -> (tile_r//8, 8, cols): reducing the leading axis
            # is pure vreg adds (no per-step cross-sublane XLU work).
            acc_ref[...] += jnp.sum(x.reshape(tile_r // 8, 8, cols), axis=0)
        else:
            acc_ref[...] += jnp.sum(x, axis=0, keepdims=True)

    if needs_mask:
        gtile = c * tiles_per_core + i

        @pl.when(gtile < mask_from)
        def _full_tile():
            _accumulate(d)

        @pl.when(gtile >= mask_from)          # ragged / overflow tiles only
        def _edge_tile():
            row_ids = (jax.lax.broadcasted_iota(jnp.int32, (tile_r, 1), 0)
                       + gtile * tile_r)
            # zero OOB rows BEFORE anything reaches the accumulator
            _accumulate(jnp.where(row_ids < rows, d, 0.0))
    else:
        _accumulate(d)

    @pl.when(i == pl.num_programs(1) - 1)
    def _finalize():
        col_sums = jnp.sum(acc_ref[...], axis=0, keepdims=True)       # (1, cols)
        w = w_ref[...].astype(jnp.float32)                            # (1, cols)
        o_ref[...] = jnp.sum(col_sums * w).reshape(1, 1, 1)


def _streaming_weighted_abs_sum(w_row, t2d, p2d, block_target_bytes):
    """sum(w_row * |t2d - p2d|); w_row has shape (1, cols). Returns f32 scalar."""
    rows, cols = t2d.shape
    itemsize = max(t2d.dtype.itemsize, p2d.dtype.itemsize)
    row_align = 8 * max(1, 4 // itemsize)          # 8 (f32) / 16 (bf16) / 32 (int8)

    row_bytes = cols * itemsize
    blk_rows = max(1, int(block_target_bytes) // max(1, row_bytes))
    if blk_rows >= rows:
        tile_r = rows
    else:
        tile_r = min(rows, max(row_align, (blk_rows // row_align) * row_align))
    grid_r = pl.cdiv(rows, tile_r)

    n_split = 2 if grid_r >= 2 else 1              # dual-TensorCore split (v7x)
    tiles_per_core = pl.cdiv(grid_r, n_split)
    overflow = n_split * tiles_per_core != grid_r
    ragged = (rows % tile_r) != 0
    needs_mask = overflow or ragged
    mask_from = grid_r - 1 if ragged else grid_r
    fold8 = (tile_r % 8 == 0)
    acc_rows = 8 if fold8 else 1

    if overflow:
        # Keep DMAs in-bounds for the (at most one) overflow step per core;
        # its contribution is masked to zero inside the kernel.
        def data_map(c, i):
            return (jnp.minimum(c * tiles_per_core + i, grid_r - 1), 0)
    else:
        def data_map(c, i):
            return (c * tiles_per_core + i, 0)

    kernel = functools.partial(
        _wsum_kernel, rows=rows, tile_r=tile_r, cols=cols,
        tiles_per_core=tiles_per_core, mask_from=mask_from,
        fold8=fold8, needs_mask=needs_mask)

    block_bytes = tile_r * cols * itemsize
    vmem_need = (2 * 2 * block_bytes               # two data streams, double-buffered
                 + 2 * cols * 4                    # resident weight (+ buffer)
                 + acc_rows * cols * 4)            # accumulator scratch
    vmem_limit = int(min((vmem_need * 5) // 4 + (8 << 20), 128 << 20))

    # TODO(synk): sweep pl.Buffered(3) on the two data streams for v7x if a
    # profile still shows exposed per-step DMA after the larger blocks.
    partials = pl.pallas_call(
        kernel,
        out_shape=jax.ShapeDtypeStruct((n_split, 1, 1), jnp.float32),
        grid_spec=pltpu.PrefetchScalarGridSpec(
            num_scalar_prefetch=0,
            grid=(n_split, tiles_per_core),
            in_specs=[
                pl.BlockSpec((1, cols), lambda c, i: (0, 0)),      # resident weight
                pl.BlockSpec((tile_r, cols), data_map),            # true
                pl.BlockSpec((tile_r, cols), data_map),            # pred
            ],
            out_specs=pl.BlockSpec((1, 1, 1), lambda c, i: (c, 0, 0)),
            scratch_shapes=[pltpu.VMEM((acc_rows, cols), jnp.float32)],
        ),
        compiler_params=pltpu.CompilerParams(
            dimension_semantics=("parallel", "arbitrary"),
            vmem_limit_bytes=vmem_limit),
    )(w_row, t2d, p2d)
    return jnp.sum(partials)


def _effective_weight_plane(w2d, d_shape):
    """Collapse the torch broadcast of w2d (trailing-aligned) against a diff of
    shape d_shape = (B, M, K) into an (M, K) plane W_eff such that
        sum(broadcast(w2d) * broadcast(|d|)) == sum(W_eff[None, :, :] * |d|).
    (w is summed over axes where d has size 1 -- those axes only replicate w;
    W_eff is always batch-invariant since the aligned w has a leading 1.)
    """
    B, M, K = d_shape
    w3 = w2d[None].astype(jnp.float32)                 # (1, B, M): torch alignment
    jnp.broadcast_shapes(w3.shape, d_shape)            # raises like torch on mismatch
    axes = tuple(a for a in range(3) if d_shape[a] == 1 and w3.shape[a] != 1)
    if axes:
        w3 = jnp.sum(w3, axis=axes, keepdims=True)
    return jnp.broadcast_to(w3, (1, M, K))[0]          # (M, K)


def _choose_group(B, plane):
    """How many whole (M*T) batch planes to pack into one lane-dense slab row."""
    best_g, best_key = 1, None
    for g in range(1, B + 1):
        if B % g:
            continue
        cols, rows = g * plane, B // g
        padded = ((cols + 127) // 128) * 128
        key = (cols <= _MAX_COLS,                 # keep row tiles pipelineable
               min(rows, 8),                      # sublane density / pipeline depth
               1024 <= cols <= 2 * _COL_TARGET,   # good lane width
               cols / padded,                     # (8,128)-tile lane utilisation
               min(cols, _COL_TARGET),            # wide rows amortise step overhead
               -cols)
        if best_key is None or key > best_key:
            best_g, best_key = g, key
    return best_g


def _wmae_impl(pred, true, wt, *, block_target_bytes):
    B, M, T = true.shape
    n = B * T                                 # torch: true.shape[0] * true.shape[-1]
    k_daily = min(2, T)                       # columns hit by the [:, :, -2:] slice
    k_intra = T - k_daily                     # columns hit by the [:, :, :-2] slice

    planes = []
    if k_intra > 0:
        planes.append(_effective_weight_plane(wt[:, :, 0], (B, M, k_intra)))
    if k_daily > 0:
        planes.append(_effective_weight_plane(wt[:, :, 1], (B, M, k_daily)))
    w_plane = planes[0] if len(planes) == 1 else jnp.concatenate(planes, axis=-1)

    # TODO(synk): a single batch plane larger than ~16K lanes would need
    # plane-splitting (row-periodic weight) to keep blocks small; not needed
    # for realistic shapes of this loss.
    plane = M * T
    g = _choose_group(B, plane)               # batch planes packed per slab row
    rows, cols = B // g, g * plane
    t2d = true.reshape(rows, cols)            # free, contiguous reshapes
    p2d = pred.reshape(rows, cols)
    w_row = jnp.tile(w_plane.reshape(1, plane), (1, g))    # tiny (1, cols), f32

    total = _streaming_weighted_abs_sum(w_row, t2d, p2d, block_target_bytes)
    return total / jnp.float32(n)


@functools.partial(jax.jit, static_argnames=("block_target_bytes",))
def wmae_loss(pred, true, wt, block_target_bytes=_DEFAULT_BLOCK_BYTES):
    return _wmae_impl(pred, true, wt, block_target_bytes=block_target_bytes)


def wmae_ref(pred, true, wt):
    """Pure-JAX reference with identical (torch-style) broadcasting."""
    n = true.shape[0] * true.shape[-1]
    intra = jnp.sum(wt[:, :, 0] * jnp.abs(true[:, :, :-2] - pred[:, :, :-2]))
    daily = jnp.sum(wt[:, :, 1] * jnp.abs(true[:, :, -2:] - pred[:, :, -2:]))
    return (intra + daily) / n


if __name__ == "__main__":
    def _check(pred, true, wt, *, rtol, ref_pred=None, ref_true=None, **kw):
        out = jax.block_until_ready(wmae_loss(pred, true, wt, **kw))
        rp = pred if ref_pred is None else ref_pred
        rt = true if ref_true is None else ref_true
        ref = jax.block_until_ready(wmae_ref(rp, rt, wt))
        assert np.allclose(np.asarray(out), np.asarray(ref),
                           rtol=rtol, atol=1e-6), (out, ref)

    # 1) Small "regular" case: M == T-2 == 2 and B == M, so the torch broadcast
    #    keeps the diff shape (per-(m, t) weights).
    B, M, T = 2, 2, 4
    kp, kt, kw = jax.random.split(jax.random.PRNGKey(0), 3)
    pred = jax.random.normal(kp, (B, M, T), dtype=jnp.float32)
    true = jax.random.normal(kt, (B, M, T), dtype=jnp.float32)
    wt = jax.random.uniform(kw, (B, M, 2), dtype=jnp.float32)
    _check(pred, true, wt, rtol=1e-5)

    # 2) "Exotic" torch-broadcast case (M == 1): the weight broadcast enlarges
    #    the product; handled via the collapsed effective-weight plane.
    B2, M2, T2 = 4, 1, 5
    kp2, kt2, kw2 = jax.random.split(jax.random.PRNGKey(1), 3)
    pred2 = jax.random.normal(kp2, (B2, M2, T2), dtype=jnp.float32)
    true2 = jax.random.normal(kt2, (B2, M2, T2), dtype=jnp.float32)
    wt2 = jax.random.uniform(kw2, (B2, M2, 2), dtype=jnp.float32)
    _check(pred2, true2, wt2, rtol=1e-5)

    # 3) Moderate case exercising the pipelined grid, the dual-core split, the
    #    ragged-edge mask and the clamped overflow tile (block target shrunk so
    #    the small demo array still spans several row tiles).
    B3, M3, T3 = 1184, 1, 64
    kp3, kt3, kw3 = jax.random.split(jax.random.PRNGKey(2), 3)
    pred3 = jax.random.normal(kp3, (B3, M3, T3), dtype=jnp.float32)
    true3 = jax.random.normal(kt3, (B3, M3, T3), dtype=jnp.float32)
    wt3 = jax.random.uniform(kw3, (B3, M3, 2), dtype=jnp.float32)
    _check(pred3, true3, wt3, rtol=5e-4)                                  # default blocks
    _check(pred3, true3, wt3, rtol=5e-4, block_target_bytes=64 * 1024)    # multi-tile path

    # 4) Same case with bf16 pred/true streamed in their native dtype
    #    (byte-based block sizing); reference computed on the f32-cast inputs.
    pred4 = pred3.astype(jnp.bfloat16)
    true4 = true3.astype(jnp.bfloat16)
    _check(pred4, true4, wt3, rtol=5e-4, block_target_bytes=64 * 1024,
           ref_pred=pred4.astype(jnp.float32), ref_true=true4.astype(jnp.float32))

    print("KERNEL_OK")
</pallas_src>

<mosaic_0001>
module attributes {stable_mosaic.version = 11 : i64} {
  func.func @_wsum_kernel(%arg0: i32, %arg1: i32, %arg2: memref<1x8xf32, #tpu.memory_space<vmem>>, %arg3: memref<2x8xf32, #tpu.memory_space<vmem>>, %arg4: memref<2x8xf32, #tpu.memory_space<vmem>>, %arg5: memref<1x1x1xf32, #tpu.memory_space<vmem>>, %arg6: memref<1x8xf32, #tpu.memory_space<vmem>>) attributes {dimension_semantics = [#tpu.dimension_semantics<parallel>, #tpu.dimension_semantics<arbitrary>], iteration_bounds = array<i64: 1, 1>, scalar_prefetch = 0 : i64, scratch_operands = 1 : i64, tpu.core_type = #tpu.core_type<tc>, window_params = [{pipeline_mode = #tpu.pipeline_mode<synchronous>, transform_indices = @transform_0, window_bounds = array<i64: 1, 8>}, {transform_indices = @transform_1, window_bounds = array<i64: 2, 8>}, {transform_indices = @transform_2, window_bounds = array<i64: 2, 8>}, {transform_indices = @transform_3, window_bounds = array<i64: 1, 1, 1>}]} {
    %c0_i32 = arith.constant 0 : i32
    %0 = arith.cmpi eq, %arg1, %c0_i32 : i32
    %1 = arith.extui %0 : i1 to i32
    %c0_i32_0 = arith.constant 0 : i32
    %2 = arith.cmpi ne, %1, %c0_i32_0 : i32
    scf.if %2 {
      %cst_10 = arith.constant 0.000000e+00 : f32
      %15 = vector.broadcast %cst_10 : f32 to vector<1x8xf32>
      %c0_11 = arith.constant 0 : index
      %c0_12 = arith.constant 0 : index
      %16 = vector.load %arg6[%c0_11, %c0_12] : memref<1x8xf32, #tpu.memory_space<vmem>>, vector<1x8xf32>
      tpu.vector_store %arg6[%c0_11, %c0_12], %15 {strides = array<i32>} : memref<1x8xf32, #tpu.memory_space<vmem>>, vector<1x8xf32>,
    } else {
    }
    %c0 = arith.constant 0 : index
    %c0_1 = arith.constant 0 : index
    %3 = vector.load %arg3[%c0, %c0_1] : memref<2x8xf32, #tpu.memory_space<vmem>>, vector<2x8xf32>
    %c0_2 = arith.constant 0 : index
    %c0_3 = arith.constant 0 : index
    %4 = vector.load %arg4[%c0_2, %c0_3] : memref<2x8xf32, #tpu.memory_space<vmem>>, vector<2x8xf32>
    %5 = arith.subf %3, %4 : vector<2x8xf32>
    %6 = math.absf %5 : vector<2x8xf32>
    %c0_4 = arith.constant 0 : index
    %c0_5 = arith.constant 0 : index
    %7 = vector.load %arg6[%c0_4, %c0_5] : memref<1x8xf32, #tpu.memory_space<vmem>>, vector<1x8xf32>
    %cst = arith.constant dense<0.000000e+00> : vector<8xf32>
    %8 = vector.multi_reduction <add>, %6, %cst [0] : vector<2x8xf32> to vector<8xf32>
    %9 = vector.shape_cast %8 : vector<8xf32> to vector<1x8xf32>
    %10 = arith.addf %7, %9 : vector<1x8xf32>
    %c0_6 = arith.constant 0 : index
    %c0_7 = arith.constant 0 : index
    %11 = vector.load %arg6[%c0_6, %c0_7] : memref<1x8xf32, #tpu.memory_space<vmem>>, vector<1x8xf32>
    tpu.vector_store %arg6[%c0_6, %c0_7], %10 {strides = array<i32>} : memref<1x8xf32, #tpu.memory_space<vmem>>, vector<1x8xf32>,
    %c0_i32_8 = arith.constant 0 : i32
    %12 = arith.cmpi eq, %arg1, %c0_i32_8 : i32
    %13 = arith.extui %12 : i1 to i32
    %c0_i32_9 = arith.constant 0 : i32
    %14 = arith.cmpi ne, %13, %c0_i32_9 : i32
    scf.if %14 {
      %c0_10 = arith.constant 0 : index
      %c0_11 = arith.constant 0 : index
      %15 = vector.load %arg6[%c0_10, %c0_11] : memref<1x8xf32, #tpu.memory_space<vmem>>, vector<1x8xf32>
      %cst_12 = arith.constant dense<0.000000e+00> : vector<8xf32>
      %16 = vector.multi_reduction <add>, %15, %cst_12 [0] : vector<1x8xf32> to vector<8xf32>
      %17 = vector.shape_cast %16 : vector<8xf32> to vector<1x8xf32>
      %c0_13 = arith.constant 0 : index
      %c0_14 = arith.constant 0 : index
      %18 = vector.load %arg2[%c0_13, %c0_14] : memref<1x8xf32, #tpu.memory_space<vmem>>, vector<1x8xf32>
      %19 = arith.mulf %17, %18 : vector<1x8xf32>
      %20 = vector.shape_cast %19 : vector<1x8xf32> to vector<1x1x8xf32>
      %cst_15 = arith.constant dense<0.000000e+00> : vector<1xf32>
      %21 = vector.multi_reduction <add>, %20, %cst_15 [1, 2] : vector<1x1x8xf32> to vector<1xf32>
      %22 = vector.shape_cast %21 : vector<1xf32> to vector<1x1x1xf32>
      %23 = vector.extract %22[0, 0, 0] : f32 from vector<1x1x1xf32>
      %24 = vector.broadcast %23 : f32 to vector<1x1x1xf32>
      %c0_16 = arith.constant 0 : index
      %c0_17 = arith.constant 0 : index
      %c0_18 = arith.constant 0 : index
      %25 = vector.load %arg5[%c0_16, %c0_17, %c0_18] : memref<1x1x1xf32, #tpu.memory_space<vmem>>, vector<1x1x1xf32>
      tpu.vector_store %arg5[%c0_16, %c0_17, %c0_18], %24 {strides = array<i32>} : memref<1x1x1xf32, #tpu.memory_space<vmem>>, vector<1x1x1xf32>,
    } else {
    }
    return
  }
  func.func @transform_0(%arg0: i32, %arg1: i32) -> (i32, i32) {
    %c0_i32 = arith.constant 0 : i32
    %c0_i32_0 = arith.constant 0 : i32
    %c0_i32_1 = arith.constant 0 : i32
    return %c0_i32, %c0_i32_0 : i32, i32
  }
  func.func @transform_1(%arg0: i32, %arg1: i32) -> (i32, i32) {
    %c1_i32 = arith.constant 1 : i32
    %0 = arith.muli %arg0, %c1_i32 : i32
    %1 = arith.addi %0, %arg1 : i32
    %c0_i32 = arith.constant 0 : i32
    %c0_i32_0 = arith.constant 0 : i32
    return %1, %c0_i32 : i32, i32
  }
  func.func @transform_2(%arg0: i32, %arg1: i32) -> (i32, i32) {
    %c1_i32 = arith.constant 1 : i32
    %0 = arith.muli %arg0, %c1_i32 : i32
    %1 = arith.addi %0, %arg1 : i32
    %c0_i32 = arith.constant 0 : i32
    %c0_i32_0 = arith.constant 0 : i32
    return %1, %c0_i32 : i32, i32
  }
  func.func @transform_3(%arg0: i32, %arg1: i32) -> (i32, i32, i32) {
    %c0_i32 = arith.constant 0 : i32
    %c0_i32_0 = arith.constant 0 : i32
    %c0_i32_1 = arith.constant 0 : i32
    return %arg0, %c0_i32, %c0_i32_0 : i32, i32, i32
  }
}

</mosaic_0001>

<llo_original>
// kernel: wmae_loss.1
$region0: #{wmae_loss.1}
  #allocation0 [shape = 'u32[]', space=smem, size = 0x4, offset = 0x4, fixed_abs, tag = 'smem constant byte address 0x4 - core index']
  #allocation1 [shape = 'u32[72,128]{1,0:T(1,128)}', space=vmem, size = 0x9000, scoped, tag = 'internal scratch']
  #allocation2 [shape = 'f32[1,8]{1,0:T(1,128)}', space=vmem, size = 0x200, scoped, tag = 'scratch operand']
  %s0 = inlined_call_operand.vmem [shape: f32[1,8], index: 0, kind: input, shape index: {}]
  %s1 = inlined_call_operand.vmem [shape: f32[2,8], index: 1, kind: input, shape index: {}]
  %s2 = inlined_call_operand.vmem [shape: f32[2,8], index: 2, kind: input, shape index: {}]
  %s3 = inlined_call_operand.hbm [shape: f32[1,1,1], index: 3, kind: output, shape index: {}]
  %s4 = sld [smem:[#allocation0]]
  $region30: #{wmae_loss.1} parent=0
    _
  %s6 = ssub.s32 1, %s4
  %s7 = scalar_select 0, %s6, %s4
  $region1: #{wmae_loss.1} parent=0
    #allocation3 [shape = 'u8[512]{0}', space=vmem, size = 0x400, scoped, tag = 'output window, operand 0, single buffered']
    #allocation4 [shape = 's32[1]{0}', space=sflag, size = 0x4, scoped, tag = 'scoped memory for wmae_loss.1']
    %8 = vsyncpa [#allocation4], 0
    // Predicated region
    $region2: #{wmae_loss.1} parent=1 // pred_check
      _
    $region3: #{wmae_loss.1} parent=1 // pred_check_branch
      %10 = sbr.rel (0) target = $region5
    $region4: #{wmae_loss.1} parent=1 // pred_region
      _
    $region5: #{wmae_loss.1} parent=1 // pred_fallthru
      _
    // Predicated region
    $region6: #{wmae_loss.1} parent=1 // pred_check
      _
    $region7: #{wmae_loss.1} parent=1 // pred_check_branch
      %12 = sbr.rel (0) target = $region9
    $region8: #{wmae_loss.1} parent=1 // pred_region
      %s13 = sadd.s32 0, 0
      %p14 = scmp.lt.s32.totalorder %s13, 0
      %s15 = scalar_select %p14, %s13, 0
      %s16 = smul.addr %s15, 2
      %s17 = scalar_lea.vmem %s1, %s16
      %s18 = sadd.s32 0, 0
    $region9: #{wmae_loss.1} parent=1 // pred_fallthru
      _
    // Predicated region
    $region10: #{wmae_loss.1} parent=1 // pred_check
      _
    $region11: #{wmae_loss.1} parent=1 // pred_check_branch
      %20 = sbr.rel (0) target = $region13
    $region12: #{wmae_loss.1} parent=1 // pred_region
      %s21 = sadd.s32 0, 0
      %p22 = scmp.lt.s32.totalorder %s21, 0
      %s23 = scalar_select %p22, %s21, 0
      %s24 = smul.addr %s23, 2
      %s25 = scalar_lea.vmem %s2, %s24
      %s26 = sadd.s32 0, 0
    $region13: #{wmae_loss.1} parent=1 // pred_fallthru
      _
    %s27 = sadd.s32 0, 0
    %p28 = scmp.lt.s32.totalorder %s27, 0
    %s29 = scalar_select %p28, %s27, 0
    %s30 = smul.addr %s29, 2
    %s31 = scalar_lea.vmem %s1, %s30
    %s32 = sadd.s32 0, 0
    %p33 = scmp.lt.s32.totalorder %s32, 0
    %s34 = scalar_select %p33, %s32, 0
    %s35 = smul.addr %s34, 2
    %s36 = scalar_lea.vmem %s2, %s35
    %s37 = sadd.s32 0, 0
    %p38 = scmp.lt.s32.totalorder %s37, 0
    %s39 = scalar_select %p38, %s37, 0
    %s40 = smul.addr %s39, 2
    %s41 = scalar_lea.vmem %s1, %s40
    %s42 = sadd.s32 0, 0
    %s43 = sadd.s32 0, 0
    %p44 = scmp.lt.s32.totalorder %s43, 0
    %s45 = scalar_select %p44, %s43, 0
    %s46 = smul.addr %s45, 2
    %s47 = scalar_lea.vmem %s2, %s46
    %s48 = sadd.s32 0, 0
    %p49 = scmp.eq.s32.totalorder 0, 0
    // Predicated region
    $region14: #{wmae_loss.1} parent=1 // pred_check
      %p50 = pneg %p49
    $region15: #{wmae_loss.1} parent=1 // pred_check_branch
      %52 = sbr.rel (%p50) target = $region17
    $region16: #{wmae_loss.1} parent=1 // pred_region
      %vm53 = vcmask 57344
      %54 = vst.msk [vmem:[#allocation2] sm:$0x1] %vm53, 0.0
    $region17: #{wmae_loss.1} parent=1 // pred_fallthru
      _
    %v55 = vld [vmem:[%s41] sm:$0x3]
    %v56 = vld [vmem:[%s47] sm:$0x3]
    %v57 = vsub.f32 %v55, %v56
    %v58 = vand.u32 2147483647, %v57
    %v59 = vld [vmem:[#allocation2] sm:$0x1]
    %vm60 = vcmask 58368
    %v61 = vsel %vm60, %v58, 0.0
    %v62 = vrot.slane %v61, 4
    %v63 = vadd.f32 %v61, %v62
    %v64 = vrot.slane %v63, 2
    %v65 = vadd.f32 %v63, %v64
    %v66 = vrot.slane %v65, 1
    %v67 = vadd.f32 %v65, %v66
    %v68 = vadd.f32 %v59, %v67
    %vm69 = vcmask 57344
    %70 = vst.msk [vmem:[#allocation2] sm:$0x1] %vm69, %v68
    // Predicated region
    $region18: #{wmae_loss.1} parent=1 // pred_check
      %p71 = pneg %p49
    $region19: #{wmae_loss.1} parent=1 // pred_check_branch
      %73 = sbr.rel (%p71) target = $region21
    $region20: #{wmae_loss.1} parent=1 // pred_region
      %v74 = vld [vmem:[#allocation2] sm:$0x1]
      %v75 = vadd.f32 %v74, 0.0
      %v76 = vld [vmem:[%s0] sm:$0x1]
      %v77 = vmul.f32 %v75, %v76
      %v78 = vsel %vm69, %v77, 0.0
      %79 = vadd.xlane.f32.xlu0 %v78
      %v80 = vpop.xlane.xlu0 %79
      %v81 = vrot.slane %v80, 4
      %v82 = vadd.f32 %v80, %v81
      %v83 = vrot.slane %v82, 2
      %v84 = vadd.f32 %v82, %v83
      %v85 = vrot.slane %v84, 1
      %v86 = vadd.f32 %v84, %v85
      %s87 = vtos %v86
      %v88 = vstv %s87
      %vm89 = vcmask 0
      %90 = vst.msk [vmem:[#allocation3] sm:$0x1] %vm89, %v88
    $region21: #{wmae_loss.1} parent=1 // pred_fallthru
      _
    // Predicated region
    $region22: #{wmae_loss.1} parent=1 // pred_check
      _
    $region23: #{wmae_loss.1} parent=1 // pred_check_branch
      %92 = sbr.rel (0) target = $region25
    $region24: #{wmae_loss.1} parent=1 // pred_region
      %94 = vsyncadd [#allocation4], 0
      %s96 = sshll.u32 [#allocation3], 4
      %s97 = int_to_ptr.vmem [resolvable:$true] %s96
      %s98 = sshll.u32 %s3, 4
      %s99 = int_to_ptr.hbm [resolvable:$true] %s98
      %101 = dma.vmem_to_hbm [thread:$0]  %s97, 16, %s99, [#allocation4]
    $region25: #{wmae_loss.1} parent=1 // pred_fallthru
      _
    // Predicated region
    $region26: #{wmae_loss.1} parent=1 // pred_check
      _
    $region27: #{wmae_loss.1} parent=1 // pred_check_branch
      %103 = sbr.rel (0) target = $region29
    $region28: #{wmae_loss.1} parent=1 // pred_region
      %105 = dma.done [#allocation4], 16
    $region29: #{wmae_loss.1} parent=1 // pred_fallthru
      _
    %106 = vsyncpa [#allocation4], 1

</llo_original>
